<compile_context>
chip_gen: v7x
topology: tpu7x:2x2x1
jax: 0.10.0
libtpu: 0.0.40
codegen_flags: <defaults>
</compile_context>

<pallas_src>
import functools

import jax
import jax.numpy as jnp
from jax.experimental import pallas as pl
from jax.experimental.pallas import tpu as pltpu


def _reward_criterion_kernel(inp_ref, seq_ref, rew_ref, out_ref, acc_ref, *,
                             batch, block_rows, need_row_mask):
    i = pl.program_id(0)

    @pl.when(i == 0)
    def _init():
        acc_ref[0] = 0.0   # sum(input * reward * mask)
        acc_ref[1] = 0.0   # sum(mask)

    inp = inp_ref[...].astype(jnp.float32)   # (tb, T)
    rew = rew_ref[...].astype(jnp.float32)   # (tb, T)
    seq = seq_ref[...]                       # (tb, T) integer

    tb, T = inp.shape

    # mask[:, 0] = 1 ; mask[:, j] = (seq[:, j-1] > 0) for j >= 1
    prev_pos = (seq > 0).astype(jnp.float32)
    maskf = jnp.concatenate(
        [jnp.ones((tb, 1), jnp.float32), prev_pos[:, : T - 1]], axis=1)

    if need_row_mask:
        # Last tile may run past the end of the batch; padded rows hold
        # undefined data, so zero their mask (and select, not multiply, below
        # so garbage * 0 can never produce NaN).
        row = jax.lax.broadcasted_iota(jnp.int32, (tb, T), 0) + i * block_rows
        maskf = jnp.where(row < batch, maskf, 0.0)

    num_terms = jnp.where(maskf > 0.0, inp * rew, 0.0)
    acc_ref[0] += jnp.sum(num_terms)
    acc_ref[1] += jnp.sum(maskf)

    @pl.when(i == pl.num_programs(0) - 1)
    def _finalize():
        # Fold the negation into the single final scalar.
        out_ref[0, 0] = -(acc_ref[0] / acc_ref[1])


def _pick_block_rows(B, T, bytes_per_elem_all_streams, target_bytes=4 << 20):
    """Rows per tile so one grid step reads ~target_bytes across all 3 inputs."""
    rows = target_bytes // max(1, T * bytes_per_elem_all_streams)
    if rows >= B:
        return B                         # a single tile covers the whole batch
    rows = max(8, (rows // 8) * 8)       # sublane-aligned block rows
    return min(rows, B)


def reward_criterion(inp, seq, reward, *, block_rows=None):
    """inp: (B,T) float, seq: (B,T) int, reward: (B,T) float -> scalar f32."""
    B, T = inp.shape
    assert seq.shape == (B, T) and reward.shape == (B, T)

    bytes_per_elem = (jnp.dtype(inp.dtype).itemsize
                      + jnp.dtype(seq.dtype).itemsize
                      + jnp.dtype(reward.dtype).itemsize)
    tb = block_rows if block_rows is not None else _pick_block_rows(B, T, bytes_per_elem)
    tb = min(tb, B)
    grid = (pl.cdiv(B, tb),)

    kernel = functools.partial(
        _reward_criterion_kernel,
        batch=B, block_rows=tb, need_row_mask=(B % tb != 0))

    out = pl.pallas_call(
        kernel,
        out_shape=jax.ShapeDtypeStruct((1, 1), jnp.float32),
        grid_spec=pltpu.PrefetchScalarGridSpec(
            num_scalar_prefetch=0,
            grid=grid,
            in_specs=[
                pl.BlockSpec((tb, T), lambda i: (i, 0)),
                pl.BlockSpec((tb, T), lambda i: (i, 0)),
                pl.BlockSpec((tb, T), lambda i: (i, 0)),
            ],
            out_specs=pl.BlockSpec(memory_space=pltpu.MemorySpace.SMEM),
            scratch_shapes=[pltpu.SMEM((2,), jnp.float32)],
        ),
        compiler_params=pltpu.CompilerParams(
            dimension_semantics=("arbitrary",),   # batch-tile axis is a reduction
            vmem_limit_bytes=32 * 1024 * 1024,
        ),
        cost_estimate=pl.CostEstimate(
            flops=5 * B * T,
            transcendentals=0,
            bytes_accessed=int(inp.nbytes + seq.nbytes + reward.nbytes + 4),
        ),
    )(inp, seq, reward)
    return out[0, 0]


def reward_criterion_ref(inp, seq, reward):
    """Pure-JAX reference mirroring the PyTorch forward."""
    inp = inp.astype(jnp.float32)
    reward = reward.astype(jnp.float32)
    mask = (seq > 0).astype(jnp.float32)
    mask = jnp.concatenate(
        [jnp.ones((mask.shape[0], 1), jnp.float32), mask[:, :-1]], axis=1)
    out = -inp * reward * mask
    return jnp.sum(out) / jnp.sum(mask)


if __name__ == "__main__":
    key = jax.random.PRNGKey(0)
    k1, k2, k3 = jax.random.split(key, 3)

    # Small shapes consistent with the module: batch=2, sequence length=8.
    B, T = 2, 8
    inp = jax.random.normal(k1, (B, T), dtype=jnp.float32)        # log-probs of sampled tokens
    seq = jax.random.randint(k2, (B, T), 0, 5, dtype=jnp.int32)   # token ids (0 == pad)
    reward = jax.random.normal(k3, (B, T), dtype=jnp.float32)     # per-token reward

    out = reward_criterion(inp, seq, reward)
    jax.block_until_ready(out)
    ref = reward_criterion_ref(inp, seq, reward)
    assert jnp.allclose(out, ref, atol=1e-5, rtol=1e-5), (out, ref)

    # Also exercise the tiled / ragged-batch accumulation path.
    k4, k5, k6 = jax.random.split(jax.random.PRNGKey(1), 3)
    B2, T2 = 20, 128
    inp2 = jax.random.normal(k4, (B2, T2), dtype=jnp.float32)
    seq2 = jax.random.randint(k5, (B2, T2), 0, 3, dtype=jnp.int32)
    rew2 = jax.random.normal(k6, (B2, T2), dtype=jnp.float32)
    out2 = reward_criterion(inp2, seq2, rew2, block_rows=8)       # grid=3, ragged tail
    jax.block_until_ready(out2)
    ref2 = reward_criterion_ref(inp2, seq2, rew2)
    assert jnp.allclose(out2, ref2, atol=1e-5, rtol=1e-5), (out2, ref2)

    print("KERNEL_OK")
</pallas_src>

<mosaic_0001>
module attributes {stable_mosaic.version = 11 : i64} {
  func.func @_reward_criterion_kernel(%arg0: i32, %arg1: memref<2x8xf32, #tpu.memory_space<vmem>>, %arg2: memref<2x8xi32, #tpu.memory_space<vmem>>, %arg3: memref<2x8xf32, #tpu.memory_space<vmem>>, %arg4: memref<1x1xf32, #tpu.memory_space<smem>>, %arg5: memref<2xf32, #tpu.memory_space<smem>>) attributes {dimension_semantics = [#tpu.dimension_semantics<arbitrary>], iteration_bounds = array<i64: 1>, scalar_prefetch = 0 : i64, scratch_operands = 1 : i64, tpu.core_type = #tpu.core_type<tc>, window_params = [{transform_indices = @transform_0, window_bounds = array<i64: 2, 8>}, {transform_indices = @transform_1, window_bounds = array<i64: 2, 8>}, {transform_indices = @transform_2, window_bounds = array<i64: 2, 8>}, {transform_indices = @transform_3, window_bounds = array<i64: 1, 1>}]} {
    %c0_i32 = arith.constant 0 : i32
    %0 = arith.cmpi eq, %arg0, %c0_i32 : i32
    %1 = arith.extui %0 : i1 to i32
    %c0_i32_0 = arith.constant 0 : i32
    %2 = arith.cmpi ne, %1, %c0_i32_0 : i32
    scf.if %2 {
      %cst_16 = arith.constant 0.000000e+00 : f32
      %c0_17 = arith.constant 0 : index
      %35 = memref.load %arg5[%c0_17] : memref<2xf32, #tpu.memory_space<smem>>
      memref.store %cst_16, %arg5[%c0_17] : memref<2xf32, #tpu.memory_space<smem>>
      %cst_18 = arith.constant 0.000000e+00 : f32
      %c1_19 = arith.constant 1 : index
      %36 = memref.load %arg5[%c1_19] : memref<2xf32, #tpu.memory_space<smem>>
      memref.store %cst_18, %arg5[%c1_19] : memref<2xf32, #tpu.memory_space<smem>>
    } else {
    }
    %c0 = arith.constant 0 : index
    %c0_1 = arith.constant 0 : index
    %3 = vector.load %arg1[%c0, %c0_1] : memref<2x8xf32, #tpu.memory_space<vmem>>, vector<2x8xf32>
    %c0_2 = arith.constant 0 : index
    %c0_3 = arith.constant 0 : index
    %4 = vector.load %arg3[%c0_2, %c0_3] : memref<2x8xf32, #tpu.memory_space<vmem>>, vector<2x8xf32>
    %c0_4 = arith.constant 0 : index
    %c0_5 = arith.constant 0 : index
    %5 = vector.load %arg2[%c0_4, %c0_5] : memref<2x8xi32, #tpu.memory_space<vmem>>, vector<2x8xi32>
    %c0_i32_6 = arith.constant 0 : i32
    %6 = vector.broadcast %c0_i32_6 : i32 to vector<2x8xi32>
    %7 = arith.cmpi sgt, %5, %6 : vector<2x8xi32>
    %8 = arith.extui %7 : vector<2x8xi1> to vector<2x8xi32>
    %9 = arith.sitofp %8 : vector<2x8xi32> to vector<2x8xf32>
    %cst = arith.constant 1.000000e+00 : f32
    %10 = vector.broadcast %cst : f32 to vector<2x1xf32>
    %11 = vector.extract_strided_slice %9 {offsets = [0, 0], sizes = [2, 7], strides = [1, 1]} : vector<2x8xf32> to vector<2x7xf32>
    %12 = tpu.concatenate %10, %11 in 1 : vector<2x1xf32>, vector<2x7xf32> -> vector<2x8xf32>
    %cst_7 = arith.constant 0.000000e+00 : f32
    %13 = vector.broadcast %cst_7 : f32 to vector<2x8xf32>
    %14 = arith.cmpf ogt, %12, %13 : vector<2x8xf32>
    %15 = arith.mulf %3, %4 : vector<2x8xf32>
    %cst_8 = arith.constant 0.000000e+00 : f32
    %16 = vector.broadcast %cst_8 : f32 to vector<2x8xf32>
    %17 = arith.select %14, %15, %16 : vector<2x8xi1>, vector<2x8xf32>
    %c0_9 = arith.constant 0 : index
    %18 = memref.load %arg5[%c0_9] : memref<2xf32, #tpu.memory_space<smem>>
    %19 = vector.shape_cast %17 : vector<2x8xf32> to vector<1x2x8xf32>
    %cst_10 = arith.constant dense<0.000000e+00> : vector<1xf32>
    %20 = vector.multi_reduction <add>, %19, %cst_10 [1, 2] : vector<1x2x8xf32> to vector<1xf32>
    %21 = vector.shape_cast %20 : vector<1xf32> to vector<1x1x1xf32>
    %22 = vector.extract %21[0, 0, 0] : f32 from vector<1x1x1xf32>
    %23 = arith.addf %18, %22 : f32
    %c0_11 = arith.constant 0 : index
    %24 = memref.load %arg5[%c0_11] : memref<2xf32, #tpu.memory_space<smem>>
    memref.store %23, %arg5[%c0_11] : memref<2xf32, #tpu.memory_space<smem>>
    %c1 = arith.constant 1 : index
    %25 = memref.load %arg5[%c1] : memref<2xf32, #tpu.memory_space<smem>>
    %26 = vector.shape_cast %12 : vector<2x8xf32> to vector<1x2x8xf32>
    %cst_12 = arith.constant dense<0.000000e+00> : vector<1xf32>
    %27 = vector.multi_reduction <add>, %26, %cst_12 [1, 2] : vector<1x2x8xf32> to vector<1xf32>
    %28 = vector.shape_cast %27 : vector<1xf32> to vector<1x1x1xf32>
    %29 = vector.extract %28[0, 0, 0] : f32 from vector<1x1x1xf32>
    %30 = arith.addf %25, %29 : f32
    %c1_13 = arith.constant 1 : index
    %31 = memref.load %arg5[%c1_13] : memref<2xf32, #tpu.memory_space<smem>>
    memref.store %30, %arg5[%c1_13] : memref<2xf32, #tpu.memory_space<smem>>
    %c0_i32_14 = arith.constant 0 : i32
    %32 = arith.cmpi eq, %arg0, %c0_i32_14 : i32
    %33 = arith.extui %32 : i1 to i32
    %c0_i32_15 = arith.constant 0 : i32
    %34 = arith.cmpi ne, %33, %c0_i32_15 : i32
    scf.if %34 {
      %c0_16 = arith.constant 0 : index
      %35 = memref.load %arg5[%c0_16] : memref<2xf32, #tpu.memory_space<smem>>
      %c1_17 = arith.constant 1 : index
      %36 = memref.load %arg5[%c1_17] : memref<2xf32, #tpu.memory_space<smem>>
      %37 = arith.divf %35, %36 : f32
      %cst_18 = arith.constant 0.000000e+00 : f32
      %38 = arith.subf %cst_18, %37 : f32
      %c0_19 = arith.constant 0 : index
      %c0_20 = arith.constant 0 : index
      %39 = memref.load %arg4[%c0_19, %c0_20] : memref<1x1xf32, #tpu.memory_space<smem>>
      memref.store %38, %arg4[%c0_19, %c0_20] : memref<1x1xf32, #tpu.memory_space<smem>>
    } else {
    }
    return
  }
  func.func @transform_0(%arg0: i32) -> (i32, i32) {
    %c0_i32 = arith.constant 0 : i32
    %c0_i32_0 = arith.constant 0 : i32
    return %arg0, %c0_i32 : i32, i32
  }
  func.func @transform_1(%arg0: i32) -> (i32, i32) {
    %c0_i32 = arith.constant 0 : i32
    %c0_i32_0 = arith.constant 0 : i32
    return %arg0, %c0_i32 : i32, i32
  }
  func.func @transform_2(%arg0: i32) -> (i32, i32) {
    %c0_i32 = arith.constant 0 : i32
    %c0_i32_0 = arith.constant 0 : i32
    return %arg0, %c0_i32 : i32, i32
  }
  func.func @transform_3(%arg0: i32) -> (i32, i32) {
    %c0_i32 = arith.constant 0 : i32
    %c0_i32_0 = arith.constant 0 : i32
    %c0_i32_1 = arith.constant 0 : i32
    return %c0_i32, %c0_i32_0 : i32, i32
  }
}

</mosaic_0001>

<llo_original>
// kernel: tpu_custom_call.1
$region0: #{tpu_custom_call.1}
  #allocation0 [shape = 'u32[]', space=smem, size = 0x4, offset = 0x4, fixed_abs, tag = 'smem constant byte address 0x4 - core index']
  #allocation1 [shape = 'u32[144,128]{1,0:T(1,128)}', space=vmem, size = 0x12000, scoped, tag = 'internal scratch']
  #allocation2 [shape = 'f32[2]{0:T(128)}', space=smem, size = 0x200, scoped, tag = 'scratch operand']
  %s0 = inlined_call_operand.hbm [shape: f32[2,8], index: 0, kind: input, shape index: {}]
  %s1 = inlined_call_operand.vmem [shape: s32[2,8], index: 1, kind: input, shape index: {}]
  %s2 = inlined_call_operand.vmem [shape: f32[2,8], index: 2, kind: input, shape index: {}]
  %s3 = inlined_call_operand.hbm [shape: f32[1,1], index: 3, kind: output, shape index: {}]
  %s4 = sld [smem:[#allocation0]]
  $region34: #{tpu_custom_call.1} parent=0
    _
  %s6 = ssub.s32 1, %s4
  %s7 = scalar_select 0, %s6, %s4
  $region1: #{tpu_custom_call.1} parent=0
    #allocation3 [shape = 'u8[1024]{0}', space=vmem, size = 0x400, scoped, tag = 'input window, operand 0, single buffered']
    #allocation4 [shape = 's32[1]{0}', space=sflag, size = 0x4, scoped, tag = 'scoped memory for tpu_custom_call.1']
    #allocation5 [shape = 's32[1]{0}', space=sflag, size = 0x4, scoped, tag = 'scoped memory for tpu_custom_call.1']
    #allocation6 [shape = 'u8[512]{0}', space=smem, size = 0x200, scoped, tag = 'output window, operand 0, single buffered']
    %8 = vsyncpa [#allocation4], 0
    %9 = vsyncpa [#allocation5], 0
    // Predicated region
    $region2: #{tpu_custom_call.1} parent=1 // pred_check
      _
    $region3: #{tpu_custom_call.1} parent=1 // pred_check_branch
      %11 = sbr.rel (0) target = $region5
    $region4: #{tpu_custom_call.1} parent=1 // pred_region
      %s13 = ssub.s32 32, 32
      %14 = vsyncadd [#allocation4], %s13
      %s16 = sshll.u32 [#allocation3], 4
      %s17 = int_to_ptr.vmem [resolvable:$true] %s16
      %19 = dma.hbm_to_vmem [thread:$0]  %s0, 32, %s17, [#allocation4]
    $region5: #{tpu_custom_call.1} parent=1 // pred_fallthru
      _
    // Predicated region
    $region6: #{tpu_custom_call.1} parent=1 // pred_check
      _
    $region7: #{tpu_custom_call.1} parent=1 // pred_check_branch
      %21 = sbr.rel (0) target = $region9
    $region8: #{tpu_custom_call.1} parent=1 // pred_region
      _
    $region9: #{tpu_custom_call.1} parent=1 // pred_fallthru
      _
    // Predicated region
    $region10: #{tpu_custom_call.1} parent=1 // pred_check
      _
    $region11: #{tpu_custom_call.1} parent=1 // pred_check_branch
      %23 = sbr.rel (0) target = $region13
    $region12: #{tpu_custom_call.1} parent=1 // pred_region
      _
    $region13: #{tpu_custom_call.1} parent=1 // pred_fallthru
      _
    // Predicated region
    $region14: #{tpu_custom_call.1} parent=1 // pred_check
      _
    $region15: #{tpu_custom_call.1} parent=1 // pred_check_branch
      %25 = sbr.rel (0) target = $region17
    $region16: #{tpu_custom_call.1} parent=1 // pred_region
      %26 = dma.done [#allocation4], 32
    $region17: #{tpu_custom_call.1} parent=1 // pred_fallthru
      _
    %p27 = scmp.eq.s32.totalorder 0, 0
    // Predicated region
    $region18: #{tpu_custom_call.1} parent=1 // pred_check
      %p28 = pneg %p27
    $region19: #{tpu_custom_call.1} parent=1 // pred_check_branch
      %30 = sbr.rel (%p28) target = $region21
    $region20: #{tpu_custom_call.1} parent=1 // pred_region
      %s31 = scalar_lea.smem [#allocation2], 0
      %32 = sst [smem:[%s31]] 0.0
      %s33 = scalar_lea.smem [#allocation2], 1
      %34 = sst [smem:[%s33]] 0.0
    $region21: #{tpu_custom_call.1} parent=1 // pred_fallthru
      _
    %v35 = vld [vmem:[#allocation3] sm:$0x3]
    %v36 = vld [vmem:[%s2] sm:$0x3]
    %v37 = vld [vmem:[%s1] sm:$0x3]
    %vm38 = vcmp.gt.s32.totalorder %v37, 0
    %v39 = vsel %vm38, 1, 0
    %v40 = vcvt.s32.f32 %v39
    %42 = vrot.lane.b32.xlu0 %v40, 1
    %v43 = vpop.permute.xlu0 %42
    %vm45 = vcmask 7168
    %v46 = vsel %vm45, 1.0, %v43
    %vm47 = vcmp.gt.f32.partialorder %v46, 0.0
    %v48 = vmul.f32 %v35, %v36
    %v49 = vsel %vm47, %v48, 0.0
    %s50 = sld [smem:[#allocation2]]
    %vm51 = vcmask 58368
    %v52 = vsel %vm51, %v49, 0.0
    %53 = vadd.xlane.f32.xlu0 %v52
    %v54 = vpop.xlane.xlu0 %53
    %v55 = vrot.slane %v54, 4
    %v56 = vadd.f32 %v54, %v55
    %v57 = vrot.slane %v56, 2
    %v58 = vadd.f32 %v56, %v57
    %v59 = vrot.slane %v58, 1
    %v60 = vadd.f32 %v58, %v59
    %s61 = vtos %v60
    %s62 = sadd.f32 %s50, %s61
    %s63 = scalar_lea.smem [#allocation2], 0
    %64 = sst [smem:[%s63]] %s62
    %s65 = sld [smem:[#allocation2 + $0x1]]
    %v66 = vsel %vm51, %v46, 0.0
    %67 = vadd.xlane.f32.xlu0 %v66
    %v68 = vpop.xlane.xlu0 %67
    %v69 = vrot.slane %v68, 4
    %v70 = vadd.f32 %v68, %v69
    %v71 = vrot.slane %v70, 2
    %v72 = vadd.f32 %v70, %v71
    %v73 = vrot.slane %v72, 1
    %v74 = vadd.f32 %v72, %v73
    %s75 = vtos %v74
    %s76 = sadd.f32 %s65, %s75
    %s77 = scalar_lea.smem [#allocation2], 1
    %78 = sst [smem:[%s77]] %s76
    // Predicated region
    $region22: #{tpu_custom_call.1} parent=1 // pred_check
      %p79 = pneg %p27
    $region23: #{tpu_custom_call.1} parent=1 // pred_check_branch
      %81 = sbr.rel (%p79) target = $region25
    $region24: #{tpu_custom_call.1} parent=1 // pred_region
      %s82 = sld [smem:[#allocation2]]
      %s83 = sld [smem:[#allocation2 + $0x1]]
      %v84 = vstv %s83
      %v85 = vrcp.pop %v84
      %s86 = vtos %v85
      %s87 = smul.f32 %s82, %s86
      %s88 = ssub.f32 0.0, %s87
      %s89 = scalar_lea.smem [#allocation6], 0
      %90 = sst [smem:[%s89]] %s88
    $region25: #{tpu_custom_call.1} parent=1 // pred_fallthru
      _
    // Predicated region
    $region26: #{tpu_custom_call.1} parent=1 // pred_check
      _
    $region27: #{tpu_custom_call.1} parent=1 // pred_check_branch
      %92 = sbr.rel (0) target = $region29
    $region28: #{tpu_custom_call.1} parent=1 // pred_region
      %s94 = ssub.s32 16, 16
      %95 = vsyncadd [#allocation5], %s94
      %98 = dma.smem_to_hbm [#allocation6], 16, %s3, [#allocation5]
    $region29: #{tpu_custom_call.1} parent=1 // pred_fallthru
      _
    // Predicated region
    $region30: #{tpu_custom_call.1} parent=1 // pred_check
      _
    $region31: #{tpu_custom_call.1} parent=1 // pred_check_branch
      %100 = sbr.rel (0) target = $region33
    $region32: #{tpu_custom_call.1} parent=1 // pred_region
      %101 = dma.done [#allocation5], 16
    $region33: #{tpu_custom_call.1} parent=1 // pred_fallthru
      _
    %102 = sfence
    %103 = vsyncpa [#allocation4], 1
    %104 = vsyncpa [#allocation5], 1

</llo_original>
